<compile_context>
chip_gen: v6e
topology: v6e:2x2x1
jax: 0.10.0
libtpu: 0.0.40
codegen_flags: <defaults>
</compile_context>

<pallas_src>
import jax
import jax.numpy as jnp
from jax import lax
from jax.experimental import pallas as pl
from jax.experimental.pallas import tpu as pltpu

_EPS = 1e-5


def _vmem_limit_bytes():
    # ~3/4 of physical VMEM, capped at 100 MiB: ~96-100 MiB on v5e/v6e
    # (128 MiB physical), ~48 MiB on v7x (64 MiB physical).
    try:
        cap = int(pltpu.get_tpu_info().vmem_capacity_bytes)
    except Exception:
        cap = 64 * 1024 * 1024
    return int(min(100 * 1024 * 1024, cap * 3 // 4))


_VMEM_LIMIT = _vmem_limit_bytes()


# ---------------------------------------------------------------------------
# Pallas kernels
# ---------------------------------------------------------------------------
def _fused_conv_stats_kernel(cat_ref, a_ref, b1_ref, bw_ref, b2_ref,
                             c2_ref, s_ref, ss_ref):
    # Pass A for one image.
    #   cat_ref: (1, H, 2*W*C) bf16  lane-concatenated [x_up || y]
    #   a_ref  : (2*W*C, W*C)  bf16  block-diag 1x1 weight, residual identity folded in
    #   bw_ref : (3, W*C, WOP) bf16  banded 3x3 weights (kw taps in the band), lane-padded
    # Emits conv2 + bias (c2) plus per-image column sum / sum-of-squares so the
    # global training-mode BatchNorm statistics can be finalized outside.
    ho = c2_ref.shape[1]
    cat = cat_ref[0]                                              # (H, 2*W*C) bf16
    # 1x1 conv over cat(x_up, y) + bias + residual, never leaves VMEM.
    z = jnp.dot(cat, a_ref[...], preferred_element_type=jnp.float32)
    z = z + b1_ref[...]                                           # (H, W*C) f32
    zb = z.astype(jnp.bfloat16)
    # 3x3 VALID conv as three banded matmuls (one per kh tap).
    acc = jnp.dot(zb[0:ho, :], bw_ref[0], preferred_element_type=jnp.float32)
    acc = acc + jnp.dot(zb[1:ho + 1, :], bw_ref[1],
                        preferred_element_type=jnp.float32)
    acc = acc + jnp.dot(zb[2:ho + 2, :], bw_ref[2],
                        preferred_element_type=jnp.float32)
    acc = acc + b2_ref[...]
    c2_ref[0] = acc
    s_ref[0] = jnp.sum(acc, axis=0, keepdims=True)
    ss_ref[0] = jnp.sum(acc * acc, axis=0, keepdims=True)


def _bn_relu_kernel(c2_ref, sc_ref, sh_ref, out_ref):
    # Pass B: y = max(c2 * scale + shift, 0), scale/shift pre-folded per channel.
    out_ref[...] = jnp.maximum(c2_ref[...] * sc_ref[...] + sh_ref[...], 0.0)


# ---------------------------------------------------------------------------
# JAX glue
# ---------------------------------------------------------------------------
def _bilinear_align_corners(x, out_h, out_w):
    # TODO(synk): bilinear upsample (gather-based resampling) kept in JAX glue.
    n, c, in_h, in_w = x.shape

    def coords(out_size, in_size):
        if out_size == 1:
            return jnp.zeros((out_size,), jnp.float32)
        return jnp.arange(out_size, dtype=jnp.float32) * (in_size - 1) / (out_size - 1)

    hc = coords(out_h, in_h)
    wc = coords(out_w, in_w)
    h0 = jnp.clip(jnp.floor(hc).astype(jnp.int32), 0, in_h - 1)
    h1 = jnp.clip(h0 + 1, 0, in_h - 1)
    w0 = jnp.clip(jnp.floor(wc).astype(jnp.int32), 0, in_w - 1)
    w1 = jnp.clip(w0 + 1, 0, in_w - 1)
    hf = (hc - h0.astype(jnp.float32)).reshape(1, 1, out_h, 1)
    wf = (wc - w0.astype(jnp.float32)).reshape(1, 1, 1, out_w)
    top = x[:, :, h0, :] * (1.0 - hf) + x[:, :, h1, :] * hf
    out = top[:, :, :, w0] * (1.0 - wf) + top[:, :, :, w1] * wf
    return out


def _block_diag(w, reps):
    # (Cin, Cout) -> (reps*Cin, reps*Cout) block-diagonal 1x1-conv weight.
    return jnp.kron(jnp.eye(reps, dtype=w.dtype), w)


def _banded_3x3(w2_t, w_in, w_out, c):
    # w2_t: torch layout (Cout, Cin, 3, 3).
    # B[kh, w*C+ci, wo*C+co] = w2_t[co, ci, kh, w-wo]  for 0 <= w-wo <= 2.
    taps = []
    for kh in range(3):
        bk = jnp.zeros((w_in * c, w_out * c), jnp.float32)
        for kw in range(3):
            sel = (jnp.arange(w_in)[:, None] == jnp.arange(w_out)[None, :] + kw)
            bk = bk + jnp.kron(sel.astype(jnp.float32),
                               jnp.transpose(w2_t[:, :, kh, kw]))
        taps.append(bk)
    return jnp.stack(taps, axis=0)


def _row_tiling(rows, pref=1024):
    # Single block when small (a split grid on a 1-TC chip is just a serial
    # loop); otherwise large 8-aligned tiles to amortize per-step overhead.
    if rows <= pref:
        return rows, rows
    padded = pl.cdiv(rows, pref) * pref
    return pref, padded


@jax.jit
def conv_w_fusion(x, y, params):
    """Pallas implementation of ConvWFusion.forward (NCHW in / NCHW out)."""
    n, c, hy, wy = y.shape
    ho, wo = hy - 2, wy - 2
    wop = ((wo * c + 127) // 128) * 128          # lane-padded 3x3 output width

    x_up = _bilinear_align_corners(x, hy, wy)                    # (N,C,H,W)

    # NCHW -> (N, H, W*C), then lane-concat [x_up || y] so the 1x1 conv is a
    # single K = 2*W*C matmul (fills the 256-deep v6e/v7x MXU).
    xu = jnp.transpose(x_up, (0, 2, 3, 1)).reshape(n, hy, wy * c)
    yr = jnp.transpose(y, (0, 2, 3, 1)).reshape(n, hy, wy * c)
    cat = jnp.concatenate([xu, yr], axis=-1).astype(jnp.bfloat16)  # (N,H,2*W*C)

    # 1x1 weight: block-diag per spatial column; residual folded in as identity.
    a_top = _block_diag(params["w1"][:c, :], wy) + jnp.eye(wy * c, dtype=jnp.float32)
    a_bot = _block_diag(params["w1"][c:, :], wy)
    a_comb = jnp.concatenate([a_top, a_bot], axis=0).astype(jnp.bfloat16)
    b1_row = jnp.tile(params["b1"], wy).reshape(1, wy * c)

    # 3x3 banded weight (kw folded into the band), output columns lane-padded.
    bw = _banded_3x3(params["w2_t"], wy, wo, c)                  # (3, W*C, Wo*C)
    bw = jnp.pad(bw, ((0, 0), (0, 0), (0, wop - wo * c))).astype(jnp.bfloat16)
    b2_row = jnp.pad(jnp.tile(params["b2"], wo), (0, wop - wo * c)).reshape(1, wop)

    # ---- Pass A: fused 1x1(+res) -> 3x3 VALID conv + bias + BN partial sums ----
    c2, s1, s2 = pl.pallas_call(
        _fused_conv_stats_kernel,
        out_shape=(
            jax.ShapeDtypeStruct((n, ho, wop), jnp.float32),
            jax.ShapeDtypeStruct((n, 1, wop), jnp.float32),
            jax.ShapeDtypeStruct((n, 1, wop), jnp.float32),
        ),
        grid=(n,),
        in_specs=[
            pl.BlockSpec((1, hy, 2 * wy * c), lambda b: (b, 0, 0)),
            pl.BlockSpec((2 * wy * c, wy * c), lambda b: (0, 0)),
            pl.BlockSpec((1, wy * c), lambda b: (0, 0)),
            pl.BlockSpec((3, wy * c, wop), lambda b: (0, 0, 0)),
            pl.BlockSpec((1, wop), lambda b: (0, 0)),
        ],
        out_specs=(
            pl.BlockSpec((1, ho, wop), lambda b: (b, 0, 0)),
            pl.BlockSpec((1, 1, wop), lambda b: (b, 0, 0)),
            pl.BlockSpec((1, 1, wop), lambda b: (b, 0, 0)),
        ),
        compiler_params=pltpu.CompilerParams(
            dimension_semantics=("parallel",), vmem_limit_bytes=_VMEM_LIMIT),
    )(cat, a_comb, b1_row, bw, b2_row)

    # Finalize global BatchNorm stats (biased variance) and fold into one FMA.
    # TODO(synk): E[x^2]-E[x]^2 can cancel for large-mean activations; switch
    # to a centered/compensated accumulation if the tolerance is tightened.
    cnt = jnp.float32(n * ho * wo)
    csum = jnp.sum(s1[:, 0, :wo * c], axis=0).reshape(wo, c).sum(axis=0)  # (C,)
    csq = jnp.sum(s2[:, 0, :wo * c], axis=0).reshape(wo, c).sum(axis=0)   # (C,)
    mean = csum / cnt
    var = jnp.maximum(csq / cnt - mean * mean, 0.0)
    scale = params["gamma"] * lax.rsqrt(var + _EPS)
    shift = params["beta"] - mean * scale
    sc_row = jnp.pad(jnp.tile(scale, wo), (0, wop - wo * c)).reshape(1, wop)
    sh_row = jnp.pad(jnp.tile(shift, wo), (0, wop - wo * c)).reshape(1, wop)

    # ---- Pass B: normalize + affine + ReLU over flattened lane-dense rows ----
    rows_b = n * ho
    trb, rows_bp = _row_tiling(rows_b)
    c2_flat = c2.reshape(rows_b, wop)
    if rows_bp != rows_b:
        c2_flat = jnp.pad(c2_flat, ((0, rows_bp - rows_b), (0, 0)))

    out_flat = pl.pallas_call(
        _bn_relu_kernel,
        out_shape=jax.ShapeDtypeStruct((rows_bp, wop), jnp.float32),
        grid=(rows_bp // trb,),
        in_specs=[
            pl.BlockSpec((trb, wop), lambda i: (i, 0)),
            pl.BlockSpec((1, wop), lambda i: (0, 0)),
            pl.BlockSpec((1, wop), lambda i: (0, 0)),
        ],
        out_specs=pl.BlockSpec((trb, wop), lambda i: (i, 0)),
        input_output_aliases={0: 0},                 # reuse c2's HBM buffer
        compiler_params=pltpu.CompilerParams(
            dimension_semantics=("parallel",), vmem_limit_bytes=_VMEM_LIMIT),
    )(c2_flat, sc_row, sh_row)

    out = out_flat[:rows_b, :wo * c].reshape(n, ho, wo, c)
    return jnp.transpose(out, (0, 3, 1, 2))                      # NCHW


# ---------------------------------------------------------------------------
# Pure-JAX reference (same math, XLA conv) for correctness checking
# ---------------------------------------------------------------------------
def ref_forward(x, y, params):
    n, c, hy, wy = y.shape
    x_up = _bilinear_align_corners(x, hy, wy)
    cat = jnp.concatenate([x_up, y], axis=1)
    dn = ("NCHW", "OIHW", "NCHW")
    z = lax.conv_general_dilated(cat, params["w1_t"], (1, 1), "VALID",
                                 dimension_numbers=dn)
    z = z + params["b1"].reshape(1, c, 1, 1) + x_up
    c2 = lax.conv_general_dilated(z, params["w2_t"], (1, 1), "VALID",
                                  dimension_numbers=dn)
    c2 = c2 + params["b2"].reshape(1, c, 1, 1)
    mean = jnp.mean(c2, axis=(0, 2, 3), keepdims=True)
    var = jnp.mean((c2 - mean) ** 2, axis=(0, 2, 3), keepdims=True)
    yhat = ((c2 - mean) * lax.rsqrt(var + _EPS) * params["gamma"].reshape(1, c, 1, 1)
            + params["beta"].reshape(1, c, 1, 1))
    return jnp.maximum(yhat, 0.0)


if __name__ == "__main__":
    key = jax.random.PRNGKey(0)
    kx, ky, k1, k2, k3, k4, k5, k6 = jax.random.split(key, 8)

    N, C = 2, 8
    HX = WX = 8          # low-res input x
    HY = WY = 16         # high-res input y (x is upsampled to this size)

    x = jax.random.normal(kx, (N, C, HX, WX), jnp.float32)
    y = jax.random.normal(ky, (N, C, HY, WY), jnp.float32)

    # Parameter shapes follow ConvWFusion.__init__ (torch layouts).
    w1_t = 0.1 * jax.random.normal(k1, (C, 2 * C, 1, 1), jnp.float32)   # conv  (Cout, 2C, 1, 1)
    b1 = 0.1 * jax.random.normal(k2, (C,), jnp.float32)
    w2_t = 0.1 * jax.random.normal(k3, (C, C, 3, 3), jnp.float32)       # convwf(Cout, Cin, 3, 3)
    b2 = 0.1 * jax.random.normal(k4, (C,), jnp.float32)
    gamma = 1.0 + 0.1 * jax.random.normal(k5, (C,), jnp.float32)        # bn.weight
    beta = 0.1 * jax.random.normal(k6, (C,), jnp.float32)               # bn.bias

    params = {
        "w1": jnp.transpose(w1_t[:, :, 0, 0], (1, 0)),                  # (2C, C)
        "w1_t": w1_t,
        "w2_t": w2_t,
        "b1": b1, "b2": b2, "gamma": gamma, "beta": beta,
    }

    out = jax.block_until_ready(conv_w_fusion(x, y, params))
    ref = jax.block_until_ready(ref_forward(x, y, params))

    assert out.shape == (N, C, HY - 2, WY - 2), out.shape
    max_err = float(jnp.max(jnp.abs(out - ref)))
    assert jnp.allclose(out, ref, atol=2e-2, rtol=2e-2), max_err

    print("KERNEL_OK")
</pallas_src>

<mosaic_0001>
module attributes {stable_mosaic.version = 11 : i64} {
  func.func @_fused_conv_stats_kernel(%arg0: i32, %arg1: memref<1x16x256xbf16, #tpu.memory_space<vmem>>, %arg2: memref<256x128xbf16, #tpu.memory_space<vmem>>, %arg3: memref<1x128xf32, #tpu.memory_space<vmem>>, %arg4: memref<3x128x128xbf16, #tpu.memory_space<vmem>>, %arg5: memref<1x128xf32, #tpu.memory_space<vmem>>, %arg6: memref<1x14x128xf32, #tpu.memory_space<vmem>>, %arg7: memref<1x1x128xf32, #tpu.memory_space<vmem>>, %arg8: memref<1x1x128xf32, #tpu.memory_space<vmem>>) attributes {dimension_semantics = [#tpu.dimension_semantics<parallel>], iteration_bounds = array<i64: 2>, scalar_prefetch = 0 : i64, scratch_operands = 0 : i64, tpu.core_type = #tpu.core_type<tc>, window_params = [{transform_indices = @transform_0, window_bounds = array<i64: 1, 16, 256>}, {pipeline_mode = #tpu.pipeline_mode<synchronous>, transform_indices = @transform_1, window_bounds = array<i64: 256, 128>}, {pipeline_mode = #tpu.pipeline_mode<synchronous>, transform_indices = @transform_2, window_bounds = array<i64: 1, 128>}, {pipeline_mode = #tpu.pipeline_mode<synchronous>, transform_indices = @transform_3, window_bounds = array<i64: 3, 128, 128>}, {pipeline_mode = #tpu.pipeline_mode<synchronous>, transform_indices = @transform_4, window_bounds = array<i64: 1, 128>}, {transform_indices = @transform_5, window_bounds = array<i64: 1, 14, 128>}, {transform_indices = @transform_6, window_bounds = array<i64: 1, 1, 128>}, {transform_indices = @transform_7, window_bounds = array<i64: 1, 1, 128>}]} {
    %c0 = arith.constant 0 : index
    %c0_0 = arith.constant 0 : index
    %c0_1 = arith.constant 0 : index
    %0 = vector.load %arg1[%c0, %c0_0, %c0_1] : memref<1x16x256xbf16, #tpu.memory_space<vmem>>, vector<1x16x256xbf16>
    %1 = vector.shape_cast %0 : vector<1x16x256xbf16> to vector<16x256xbf16>
    %c0_2 = arith.constant 0 : index
    %c0_3 = arith.constant 0 : index
    %2 = vector.load %arg2[%c0_2, %c0_3] : memref<256x128xbf16, #tpu.memory_space<vmem>>, vector<256x128xbf16>
    %cst = arith.constant dense<0.000000e+00> : vector<16x128xf32>
    %3 = tpu.matmul %1, %2, %cst {dimension_numbers = #tpu.dot_dimension_numbers<[1], [0], [0], [1], [0, 0, 1, 1], [], []>} : vector<16x256xbf16>, vector<256x128xbf16>, vector<16x128xf32> -> vector<16x128xf32>
    %c0_4 = arith.constant 0 : index
    %c0_5 = arith.constant 0 : index
    %4 = vector.load %arg3[%c0_4, %c0_5] : memref<1x128xf32, #tpu.memory_space<vmem>>, vector<1x128xf32>
    %5 = vector.broadcast %4 : vector<1x128xf32> to vector<16x128xf32>
    %6 = arith.addf %3, %5 : vector<16x128xf32>
    %7 = arith.truncf %6 : vector<16x128xf32> to vector<16x128xbf16>
    %8 = vector.extract_strided_slice %7 {offsets = [0, 0], sizes = [14, 128], strides = [1, 1]} : vector<16x128xbf16> to vector<14x128xbf16>
    %c0_6 = arith.constant 0 : index
    %c0_7 = arith.constant 0 : index
    %c0_8 = arith.constant 0 : index
    %9 = vector.load %arg4[%c0_6, %c0_7, %c0_8] : memref<3x128x128xbf16, #tpu.memory_space<vmem>>, vector<1x128x128xbf16>
    %10 = vector.shape_cast %9 : vector<1x128x128xbf16> to vector<128x128xbf16>
    %cst_9 = arith.constant dense<0.000000e+00> : vector<14x128xf32>
    %11 = tpu.matmul %8, %10, %cst_9 {dimension_numbers = #tpu.dot_dimension_numbers<[1], [0], [0], [1], [0, 0, 1, 1], [], []>} : vector<14x128xbf16>, vector<128x128xbf16>, vector<14x128xf32> -> vector<14x128xf32>
    %12 = vector.extract_strided_slice %7 {offsets = [1, 0], sizes = [14, 128], strides = [1, 1]} : vector<16x128xbf16> to vector<14x128xbf16>
    %c1 = arith.constant 1 : index
    %c0_10 = arith.constant 0 : index
    %c0_11 = arith.constant 0 : index
    %13 = vector.load %arg4[%c1, %c0_10, %c0_11] : memref<3x128x128xbf16, #tpu.memory_space<vmem>>, vector<1x128x128xbf16>
    %14 = vector.shape_cast %13 : vector<1x128x128xbf16> to vector<128x128xbf16>
    %cst_12 = arith.constant dense<0.000000e+00> : vector<14x128xf32>
    %15 = tpu.matmul %12, %14, %cst_12 {dimension_numbers = #tpu.dot_dimension_numbers<[1], [0], [0], [1], [0, 0, 1, 1], [], []>} : vector<14x128xbf16>, vector<128x128xbf16>, vector<14x128xf32> -> vector<14x128xf32>
    %16 = arith.addf %11, %15 : vector<14x128xf32>
    %17 = vector.extract_strided_slice %7 {offsets = [2, 0], sizes = [14, 128], strides = [1, 1]} : vector<16x128xbf16> to vector<14x128xbf16>
    %c2 = arith.constant 2 : index
    %c0_13 = arith.constant 0 : index
    %c0_14 = arith.constant 0 : index
    %18 = vector.load %arg4[%c2, %c0_13, %c0_14] : memref<3x128x128xbf16, #tpu.memory_space<vmem>>, vector<1x128x128xbf16>
    %19 = vector.shape_cast %18 : vector<1x128x128xbf16> to vector<128x128xbf16>
    %cst_15 = arith.constant dense<0.000000e+00> : vector<14x128xf32>
    %20 = tpu.matmul %17, %19, %cst_15 {dimension_numbers = #tpu.dot_dimension_numbers<[1], [0], [0], [1], [0, 0, 1, 1], [], []>} : vector<14x128xbf16>, vector<128x128xbf16>, vector<14x128xf32> -> vector<14x128xf32>
    %21 = arith.addf %16, %20 : vector<14x128xf32>
    %c0_16 = arith.constant 0 : index
    %c0_17 = arith.constant 0 : index
    %22 = vector.load %arg5[%c0_16, %c0_17] : memref<1x128xf32, #tpu.memory_space<vmem>>, vector<1x128xf32>
    %23 = vector.broadcast %22 : vector<1x128xf32> to vector<14x128xf32>
    %24 = arith.addf %21, %23 : vector<14x128xf32>
    %c0_18 = arith.constant 0 : index
    %c0_19 = arith.constant 0 : index
    %c0_20 = arith.constant 0 : index
    %25 = vector.load %arg6[%c0_18, %c0_19, %c0_20] : memref<1x14x128xf32, #tpu.memory_space<vmem>>, vector<1x14x128xf32>
    %26 = vector.shape_cast %25 : vector<1x14x128xf32> to vector<14x128xf32>
    %27 = vector.shape_cast %24 : vector<14x128xf32> to vector<1x14x128xf32>
    tpu.vector_store %arg6[%c0_18, %c0_19, %c0_20], %27 {strides = array<i32>} : memref<1x14x128xf32, #tpu.memory_space<vmem>>, vector<1x14x128xf32>,
    %cst_21 = arith.constant dense<0.000000e+00> : vector<128xf32>
    %28 = vector.multi_reduction <add>, %24, %cst_21 [0] : vector<14x128xf32> to vector<128xf32>
    %29 = vector.shape_cast %28 : vector<128xf32> to vector<1x128xf32>
    %c0_22 = arith.constant 0 : index
    %c0_23 = arith.constant 0 : index
    %c0_24 = arith.constant 0 : index
    %30 = vector.load %arg7[%c0_22, %c0_23, %c0_24] : memref<1x1x128xf32, #tpu.memory_space<vmem>>, vector<1x1x128xf32>
    %31 = vector.shape_cast %30 : vector<1x1x128xf32> to vector<1x128xf32>
    %32 = vector.shape_cast %29 : vector<1x128xf32> to vector<1x1x128xf32>
    tpu.vector_store %arg7[%c0_22, %c0_23, %c0_24], %32 {strides = array<i32>} : memref<1x1x128xf32, #tpu.memory_space<vmem>>, vector<1x1x128xf32>,
    %33 = arith.mulf %24, %24 : vector<14x128xf32>
    %cst_25 = arith.constant dense<0.000000e+00> : vector<128xf32>
    %34 = vector.multi_reduction <add>, %33, %cst_25 [0] : vector<14x128xf32> to vector<128xf32>
    %35 = vector.shape_cast %34 : vector<128xf32> to vector<1x128xf32>
    %c0_26 = arith.constant 0 : index
    %c0_27 = arith.constant 0 : index
    %c0_28 = arith.constant 0 : index
    %36 = vector.load %arg8[%c0_26, %c0_27, %c0_28] : memref<1x1x128xf32, #tpu.memory_space<vmem>>, vector<1x1x128xf32>
    %37 = vector.shape_cast %36 : vector<1x1x128xf32> to vector<1x128xf32>
    %38 = vector.shape_cast %35 : vector<1x128xf32> to vector<1x1x128xf32>
    tpu.vector_store %arg8[%c0_26, %c0_27, %c0_28], %38 {strides = array<i32>} : memref<1x1x128xf32, #tpu.memory_space<vmem>>, vector<1x1x128xf32>,
    return
  }
  func.func @transform_0(%arg0: i32) -> (i32, i32, i32) {
    %c0_i32 = arith.constant 0 : i32
    %c0_i32_0 = arith.constant 0 : i32
    %c0_i32_1 = arith.constant 0 : i32
    return %arg0, %c0_i32, %c0_i32_0 : i32, i32, i32
  }
  func.func @transform_1(%arg0: i32) -> (i32, i32) {
    %c0_i32 = arith.constant 0 : i32
    %c0_i32_0 = arith.constant 0 : i32
    %c0_i32_1 = arith.constant 0 : i32
    return %c0_i32, %c0_i32_0 : i32, i32
  }
  func.func @transform_2(%arg0: i32) -> (i32, i32) {
    %c0_i32 = arith.constant 0 : i32
    %c0_i32_0 = arith.constant 0 : i32
    %c0_i32_1 = arith.constant 0 : i32
    return %c0_i32, %c0_i32_0 : i32, i32
  }
  func.func @transform_3(%arg0: i32) -> (i32, i32, i32) {
    %c0_i32 = arith.constant 0 : i32
    %c0_i32_0 = arith.constant 0 : i32
    %c0_i32_1 = arith.constant 0 : i32
    %c0_i32_2 = arith.constant 0 : i32
    return %c0_i32, %c0_i32_0, %c0_i32_1 : i32, i32, i32
  }
  func.func @transform_4(%arg0: i32) -> (i32, i32) {
    %c0_i32 = arith.constant 0 : i32
    %c0_i32_0 = arith.constant 0 : i32
    %c0_i32_1 = arith.constant 0 : i32
    return %c0_i32, %c0_i32_0 : i32, i32
  }
  func.func @transform_5(%arg0: i32) -> (i32, i32, i32) {
    %c0_i32 = arith.constant 0 : i32
    %c0_i32_0 = arith.constant 0 : i32
    %c0_i32_1 = arith.constant 0 : i32
    return %arg0, %c0_i32, %c0_i32_0 : i32, i32, i32
  }
  func.func @transform_6(%arg0: i32) -> (i32, i32, i32) {
    %c0_i32 = arith.constant 0 : i32
    %c0_i32_0 = arith.constant 0 : i32
    %c0_i32_1 = arith.constant 0 : i32
    return %arg0, %c0_i32, %c0_i32_0 : i32, i32, i32
  }
  func.func @transform_7(%arg0: i32) -> (i32, i32, i32) {
    %c0_i32 = arith.constant 0 : i32
    %c0_i32_0 = arith.constant 0 : i32
    %c0_i32_1 = arith.constant 0 : i32
    return %arg0, %c0_i32, %c0_i32_0 : i32, i32, i32
  }
}

module attributes {stable_mosaic.version = 11 : i64} {
  func.func @_bn_relu_kernel(%arg0: i32, %arg1: memref<28x128xf32, #tpu.memory_space<vmem>>, %arg2: memref<1x128xf32, #tpu.memory_space<vmem>>, %arg3: memref<1x128xf32, #tpu.memory_space<vmem>>, %arg4: memref<28x128xf32, #tpu.memory_space<vmem>>) attributes {dimension_semantics = [#tpu.dimension_semantics<parallel>], iteration_bounds = array<i64: 1>, scalar_prefetch = 0 : i64, scratch_operands = 0 : i64, tpu.core_type = #tpu.core_type<tc>, window_params = [{transform_indices = @transform_0, window_bounds = array<i64: 28, 128>}, {pipeline_mode = #tpu.pipeline_mode<synchronous>, transform_indices = @transform_1, window_bounds = array<i64: 1, 128>}, {pipeline_mode = #tpu.pipeline_mode<synchronous>, transform_indices = @transform_2, window_bounds = array<i64: 1, 128>}, {transform_indices = @transform_3, window_bounds = array<i64: 28, 128>}]} {
    %c0 = arith.constant 0 : index
    %c0_0 = arith.constant 0 : index
    %0 = vector.load %arg1[%c0, %c0_0] : memref<28x128xf32, #tpu.memory_space<vmem>>, vector<28x128xf32>
    %c0_1 = arith.constant 0 : index
    %c0_2 = arith.constant 0 : index
    %1 = vector.load %arg2[%c0_1, %c0_2] : memref<1x128xf32, #tpu.memory_space<vmem>>, vector<1x128xf32>
    %2 = vector.broadcast %1 : vector<1x128xf32> to vector<28x128xf32>
    %3 = arith.mulf %0, %2 : vector<28x128xf32>
    %c0_3 = arith.constant 0 : index
    %c0_4 = arith.constant 0 : index
    %4 = vector.load %arg3[%c0_3, %c0_4] : memref<1x128xf32, #tpu.memory_space<vmem>>, vector<1x128xf32>
    %5 = vector.broadcast %4 : vector<1x128xf32> to vector<28x128xf32>
    %6 = arith.addf %3, %5 : vector<28x128xf32>
    %cst = arith.constant 0.000000e+00 : f32
    %7 = vector.broadcast %cst : f32 to vector<28x128xf32>
    %8 = arith.maximumf %6, %7 : vector<28x128xf32>
    %c0_5 = arith.constant 0 : index
    %c0_6 = arith.constant 0 : index
    %9 = vector.load %arg4[%c0_5, %c0_6] : memref<28x128xf32, #tpu.memory_space<vmem>>, vector<28x128xf32>
    tpu.vector_store %arg4[%c0_5, %c0_6], %8 {strides = array<i32>} : memref<28x128xf32, #tpu.memory_space<vmem>>, vector<28x128xf32>,
    return
  }
  func.func @transform_0(%arg0: i32) -> (i32, i32) {
    %c0_i32 = arith.constant 0 : i32
    %c0_i32_0 = arith.constant 0 : i32
    return %arg0, %c0_i32 : i32, i32
  }
  func.func @transform_1(%arg0: i32) -> (i32, i32) {
    %c0_i32 = arith.constant 0 : i32
    %c0_i32_0 = arith.constant 0 : i32
    %c0_i32_1 = arith.constant 0 : i32
    return %c0_i32, %c0_i32_0 : i32, i32
  }
  func.func @transform_2(%arg0: i32) -> (i32, i32) {
    %c0_i32 = arith.constant 0 : i32
    %c0_i32_0 = arith.constant 0 : i32
    %c0_i32_1 = arith.constant 0 : i32
    return %c0_i32, %c0_i32_0 : i32, i32
  }
  func.func @transform_3(%arg0: i32) -> (i32, i32) {
    %c0_i32 = arith.constant 0 : i32
    %c0_i32_0 = arith.constant 0 : i32
    return %arg0, %c0_i32 : i32, i32
  }
}

</mosaic_0001>

<llo_original>
// kernel: tile.23
$region0: #{tile.23}
  #allocation0 [shape = 's32[1]{0}', space=sflag, size = 0x4, scoped, tag = 'scoped memory for tile.23']
  %s0 = inlined_call_operand.vmem [shape: f32[8], index: 0, kind: input, shape index: {}]
  %s1 = inlined_call_operand.vmem [shape: f32[16,8], index: 1, kind: output, shape index: {}]
  // Predicated region
  $region2: #{tile.23} parent=0 // pred_check
    _
  $region3: #{tile.23} parent=0 // pred_check_branch
    %3 = sbr.rel (0) target = $region5
  $region4: #{tile.23} parent=0 // pred_region
    _
  $region5: #{tile.23} parent=0 // pred_fallthru
    _
  %v4 = vld [vmem:[%s0] ss:$0 sm:$0xff]
  %5 = vst [vmem:[%s1] sm:$0xff] %v4
  %s6 = scalar_lea.vmem %s1, 8
  %7 = vst [vmem:[%s6] sm:$0xff] %v4

// kernel: tile.24
$region0: #{tile.24}
  %s0 = inlined_call_operand.vmem [shape: f32[16,8], index: 0, kind: input, shape index: {}]
  %s1 = inlined_call_operand.vmem [shape: f32[1,128], index: 1, kind: output, shape index: {}]
  $region1: #{tile.24} parent=0
    #allocation0 [shape = 'u8[4096]{0}', space=vmem, size = 0x1000, scoped, tag = 'scoped mem for output reshape']
    %v2 = vld [vmem:[%s0] sm:$0x1]
    %vm3 = vcmask 64512
    %4 = vst.msk [vmem:[#allocation0] sm:$0x1] %vm3, %v2
    %s5 = scalar_lea.vmem %s0, 15
    %v6 = vld [vmem:[%s5] sm:$0x1]
    %7 = vrot.lane.b32.xlu0 %v6, 120
    %v8 = vpop.permute.xlu0 %7
    %vm9 = vcmask 1048512
    %10 = vst.msk [vmem:[#allocation0] sm:$0x1] %vm9, %v8
    %s11 = scalar_lea.vmem %s0, 14
    %v12 = vld [vmem:[%s11] sm:$0x1]
    %13 = vrot.lane.b32.xlu0 %v12, 112
    %v14 = vpop.permute.xlu0 %13
    %vm15 = vcmask 982912
    %16 = vst.msk [vmem:[#allocation0] sm:$0x1] %vm15, %v14
    %s17 = scalar_lea.vmem %s0, 13
    %v18 = vld [vmem:[%s17] sm:$0x1]
    %19 = vrot.lane.b32.xlu0 %v18, 104
    %v20 = vpop.permute.xlu0 %19
    %vm21 = vcmask 917312
    %22 = vst.msk [vmem:[#allocation0] sm:$0x1] %vm21, %v20
    %s23 = scalar_lea.vmem %s0, 12
    %v24 = vld [vmem:[%s23] sm:$0x1]
    %25 = vrot.lane.b32.xlu0 %v24, 96
    %v26 = vpop.permute.xlu0 %25
    %vm27 = vcmask 851712
    %28 = vst.msk [vmem:[#allocation0] sm:$0x1] %vm27, %v26
    %s29 = scalar_lea.vmem %s0, 11
    %v30 = vld [vmem:[%s29] sm:$0x1]
    %31 = vrot.lane.b32.xlu0 %v30, 88
    %v32 = vpop.permute.xlu0 %31
    %vm33 = vcmask 786112
    %34 = vst.msk [vmem:[#allocation0] sm:$0x1] %vm33, %v32
    %s35 = scalar_lea.vmem %s0, 10
    %v36 = vld [vmem:[%s35] sm:$0x1]
    %37 = vrot.lane.b32.xlu0 %v36, 80
    %v38 = vpop.permute.xlu0 %37
    %vm39 = vcmask 720512
    %40 = vst.msk [vmem:[#allocation0] sm:$0x1] %vm39, %v38
    %s41 = scalar_lea.vmem %s0, 9
    %v42 = vld [vmem:[%s41] sm:$0x1]
    %43 = vrot.lane.b32.xlu0 %v42, 72
    %v44 = vpop.permute.xlu0 %43
    %vm45 = vcmask 654912
    %46 = vst.msk [vmem:[#allocation0] sm:$0x1] %vm45, %v44
    %s47 = scalar_lea.vmem %s0, 8
    %v48 = vld [vmem:[%s47] sm:$0x1]
    %49 = vrot.lane.b32.xlu0 %v48, 64
    %v50 = vpop.permute.xlu0 %49
    %vm51 = vcmask 589312
    %52 = vst.msk [vmem:[#allocation0] sm:$0x1] %vm51, %v50
    %s53 = scalar_lea.vmem %s0, 7
    %v54 = vld [vmem:[%s53] sm:$0x1]
    %55 = vrot.lane.b32.xlu0 %v54, 56
    %v56 = vpop.permute.xlu0 %55
    %vm57 = vcmask 523712
    %58 = vst.msk [vmem:[#allocation0] sm:$0x1] %vm57, %v56
    %s59 = scalar_lea.vmem %s0, 6
    %v60 = vld [vmem:[%s59] sm:$0x1]
    %61 = vrot.lane.b32.xlu0 %v60, 48
    %v62 = vpop.permute.xlu0 %61
    %vm63 = vcmask 458112
    %64 = vst.msk [vmem:[#allocation0] sm:$0x1] %vm63, %v62
    %s65 = scalar_lea.vmem %s0, 5
    %v66 = vld [vmem:[%s65] sm:$0x1]
    %67 = vrot.lane.b32.xlu0 %v66, 40
    %v68 = vpop.permute.xlu0 %67
    %vm69 = vcmask 392512
    %70 = vst.msk [vmem:[#allocation0] sm:$0x1] %vm69, %v68
    %s71 = scalar_lea.vmem %s0, 4
    %v72 = vld [vmem:[%s71] sm:$0x1]
    %73 = vrot.lane.b32.xlu0 %v72, 32
    %v74 = vpop.permute.xlu0 %73
    %vm75 = vcmask 326912
    %76 = vst.msk [vmem:[#allocation0] sm:$0x1] %vm75, %v74
    %s77 = scalar_lea.vmem %s0, 3
    %v78 = vld [vmem:[%s77] sm:$0x1]
    %79 = vrot.lane.b32.xlu0 %v78, 24
    %v80 = vpop.permute.xlu0 %79
    %vm81 = vcmask 261312
    %82 = vst.msk [vmem:[#allocation0] sm:$0x1] %vm81, %v80
    %s83 = scalar_lea.vmem %s0, 2
    %v84 = vld [vmem:[%s83] sm:$0x1]
    %85 = vrot.lane.b32.xlu0 %v84, 16
    %v86 = vpop.permute.xlu0 %85
    %vm87 = vcmask 195712
    %88 = vst.msk [vmem:[#allocation0] sm:$0x1] %vm87, %v86
    %s89 = scalar_lea.vmem %s0, 1
    %v90 = vld [vmem:[%s89] sm:$0x1]
    %91 = vrot.lane.b32.xlu0 %v90, 8
    %v92 = vpop.permute.xlu0 %91
    %vm93 = vcmask 130112
    %94 = vst.msk [vmem:[#allocation0] sm:$0x1] %vm93, %v92
    %s96 = sshll.u32 1, 1
    %s97 = ssub.s32 %s96, 1
    %v99 = vld [vmem:[#allocation0] sm:%s97]
    %s100 = sshll.u32 1, 1
    %s101 = ssub.s32 %s100, 1
    %102 = vst [vmem:[%s1] sm:%s101] %v99

// kernel: tile.28
$region0: #{tile.28}
  #allocation0 [shape = 's32[1]{0}', space=sflag, size = 0x4, scoped, tag = 'scoped memory for tile.28']
  %s0 = inlined_call_operand.vmem [shape: f32[8], index: 0, kind: input, shape index: {}]
  %s1 = inlined_call_operand.vmem [shape: f32[14,8], index: 1, kind: output, shape index: {}]
  // Predicated region
  $region2: #{tile.28} parent=0 // pred_check
    _
  $region3: #{tile.28} parent=0 // pred_check_branch
    %3 = sbr.rel (0) target = $region5
  $region4: #{tile.28} parent=0 // pred_region
    _
  $region5: #{tile.28} parent=0 // pred_fallthru
    _
  %v4 = vld [vmem:[%s0] ss:$0 sm:$0xff]
  %5 = vst [vmem:[%s1] sm:$0xff] %v4
  %s6 = scalar_lea.vmem %s1, 8
  %7 = vst [vmem:[%s6] sm:$0xff] %v4

// kernel: tile.29
$region0: #{tile.29}
  %s0 = inlined_call_operand.vmem [shape: f32[14,8], index: 0, kind: input, shape index: {}]
  %s1 = inlined_call_operand.vmem [shape: f32[112], index: 1, kind: output, shape index: {}]
  $region1: #{tile.29} parent=0
    #allocation0 [shape = 'u8[4096]{0}', space=vmem, size = 0x1000, scoped, tag = 'scoped mem for output reshape']
    %v2 = vld [vmem:[%s0] sm:$0x1]
    %vm3 = vcmask 64512
    %4 = vst.msk [vmem:[#allocation0] sm:$0x1] %vm3, %v2
    %s5 = scalar_lea.vmem %s0, 13
    %v6 = vld [vmem:[%s5] sm:$0x1]
    %7 = vrot.lane.b32.xlu0 %v6, 104
    %v8 = vpop.permute.xlu0 %7
    %vm9 = vcmask 917312
    %10 = vst.msk [vmem:[#allocation0] sm:$0x1] %vm9, %v8
    %s11 = scalar_lea.vmem %s0, 12
    %v12 = vld [vmem:[%s11] sm:$0x1]
    %13 = vrot.lane.b32.xlu0 %v12, 96
    %v14 = vpop.permute.xlu0 %13
    %vm15 = vcmask 851712
    %16 = vst.msk [vmem:[#allocation0] sm:$0x1] %vm15, %v14
    %s17 = scalar_lea.vmem %s0, 11
    %v18 = vld [vmem:[%s17] sm:$0x1]
    %19 = vrot.lane.b32.xlu0 %v18, 88
    %v20 = vpop.permute.xlu0 %19
    %vm21 = vcmask 786112
    %22 = vst.msk [vmem:[#allocation0] sm:$0x1] %vm21, %v20
    %s23 = scalar_lea.vmem %s0, 10
    %v24 = vld [vmem:[%s23] sm:$0x1]
    %25 = vrot.lane.b32.xlu0 %v24, 80
    %v26 = vpop.permute.xlu0 %25
    %vm27 = vcmask 720512
    %28 = vst.msk [vmem:[#allocation0] sm:$0x1] %vm27, %v26
    %s29 = scalar_lea.vmem %s0, 9
    %v30 = vld [vmem:[%s29] sm:$0x1]
    %31 = vrot.lane.b32.xlu0 %v30, 72
    %v32 = vpop.permute.xlu0 %31
    %vm33 = vcmask 654912
    %34 = vst.msk [vmem:[#allocation0] sm:$0x1] %vm33, %v32
    %s35 = scalar_lea.vmem %s0, 8
    %v36 = vld [vmem:[%s35] sm:$0x1]
    %37 = vrot.lane.b32.xlu0 %v36, 64
    %v38 = vpop.permute.xlu0 %37
    %vm39 = vcmask 589312
    %40 = vst.msk [vmem:[#allocation0] sm:$0x1] %vm39, %v38
    %s41 = scalar_lea.vmem %s0, 7
    %v42 = vld [vmem:[%s41] sm:$0x1]
    %43 = vrot.lane.b32.xlu0 %v42, 56
    %v44 = vpop.permute.xlu0 %43
    %vm45 = vcmask 523712
    %46 = vst.msk [vmem:[#allocation0] sm:$0x1] %vm45, %v44
    %s47 = scalar_lea.vmem %s0, 6
    %v48 = vld [vmem:[%s47] sm:$0x1]
    %49 = vrot.lane.b32.xlu0 %v48, 48
    %v50 = vpop.permute.xlu0 %49
    %vm51 = vcmask 458112
    %52 = vst.msk [vmem:[#allocation0] sm:$0x1] %vm51, %v50
    %s53 = scalar_lea.vmem %s0, 5
    %v54 = vld [vmem:[%s53] sm:$0x1]
    %55 = vrot.lane.b32.xlu0 %v54, 40
    %v56 = vpop.permute.xlu0 %55
    %vm57 = vcmask 392512
    %58 = vst.msk [vmem:[#allocation0] sm:$0x1] %vm57, %v56
    %s59 = scalar_lea.vmem %s0, 4
    %v60 = vld [vmem:[%s59] sm:$0x1]
    %61 = vrot.lane.b32.xlu0 %v60, 32
    %v62 = vpop.permute.xlu0 %61
    %vm63 = vcmask 326912
    %64 = vst.msk [vmem:[#allocation0] sm:$0x1] %vm63, %v62
    %s65 = scalar_lea.vmem %s0, 3
    %v66 = vld [vmem:[%s65] sm:$0x1]
    %67 = vrot.lane.b32.xlu0 %v66, 24
    %v68 = vpop.permute.xlu0 %67
    %vm69 = vcmask 261312
    %70 = vst.msk [vmem:[#allocation0] sm:$0x1] %vm69, %v68
    %s71 = scalar_lea.vmem %s0, 2
    %v72 = vld [vmem:[%s71] sm:$0x1]
    %73 = vrot.lane.b32.xlu0 %v72, 16
    %v74 = vpop.permute.xlu0 %73
    %vm75 = vcmask 195712
    %76 = vst.msk [vmem:[#allocation0] sm:$0x1] %vm75, %v74
    %s77 = scalar_lea.vmem %s0, 1
    %v78 = vld [vmem:[%s77] sm:$0x1]
    %79 = vrot.lane.b32.xlu0 %v78, 8
    %v80 = vpop.permute.xlu0 %79
    %vm81 = vcmask 130112
    %82 = vst.msk [vmem:[#allocation0] sm:$0x1] %vm81, %v80
    %s84 = sshll.u32 1, 1
    %s85 = ssub.s32 %s84, 1
    %v87 = vld [vmem:[#allocation0] sm:%s85]
    %s88 = sshll.u32 1, 1
    %s89 = ssub.s32 %s88, 1
    %90 = vst [vmem:[%s1] sm:%s89] %v87

</llo_original>
